<compile_context>
chip_gen: v5e
topology: v5e:2x2
jax: 0.10.0
libtpu: 0.0.40
codegen_flags: <defaults>
</compile_context>

<pallas_src>
import functools
import math

import jax
import jax.numpy as jnp
import numpy as np
from jax.experimental import pallas as pl
from jax.experimental.pallas import tpu as pltpu

LAYER_NORM_EPS = 1e-12
_NEG_INF = -10000.0


# ----------------------------------------------------------------------------
# Hardware-aware knobs.
# ----------------------------------------------------------------------------
@functools.lru_cache(maxsize=None)
def _vmem_limit_bytes():
    # ~75% of physical VMEM: ~96 MiB on v5e/v6e (128 MiB), ~48 MiB on v7x
    # (64 MiB) -- leaves headroom for Mosaic internal scratch / spill space.
    try:
        return int(pltpu.get_tpu_info().vmem_capacity_bytes * 3 // 4)
    except Exception:
        return 48 * 1024 * 1024


def _compiler_params(dims):
    return pltpu.CompilerParams(dimension_semantics=dims,
                                vmem_limit_bytes=_vmem_limit_bytes())


@functools.lru_cache(maxsize=None)
def _single_buffer_supported():
    """Probe whether BlockSpec(pipeline_mode=pl.Buffered(1)) lowers on this JAX."""
    if not hasattr(pl, "Buffered"):
        return False

    def _copy(x_ref, o_ref):
        o_ref[...] = x_ref[...]

    try:
        spec = pl.BlockSpec((8, 128), lambda i: (0, 0),
                            pipeline_mode=pl.Buffered(1))
        out = pl.pallas_call(
            _copy,
            out_shape=jax.ShapeDtypeStruct((8, 128), jnp.float32),
            grid=(1,), in_specs=[spec],
            out_specs=pl.BlockSpec((8, 128), lambda i: (0, 0)),
        )(jnp.zeros((8, 128), jnp.float32))
        jax.block_until_ready(out)
        return True
    except Exception:
        return False


def _const_spec(block_shape, index_map):
    """BlockSpec for a grid-invariant operand (weights / biases / LN params).
    Single-buffer it when supported: double-buffering a constant block only
    doubles its VMEM footprint with zero pipelining benefit."""
    if _single_buffer_supported():
        return pl.BlockSpec(block_shape, index_map, pipeline_mode=pl.Buffered(1))
    return pl.BlockSpec(block_shape, index_map)


def _pick_tile(n, pref):
    t = pref
    while t >= 8:
        if n % t == 0:
            return t
        t //= 2
    return n


# ----------------------------------------------------------------------------
# In-kernel math helpers (f32).
# ----------------------------------------------------------------------------
def _erf_approx(x):
    # Abramowitz & Stegun 7.1.26 (max abs error ~1.5e-7).
    p = 0.3275911
    a1, a2, a3, a4, a5 = (0.254829592, -0.284496736, 1.421413741,
                          -1.453152027, 1.061405429)
    ax = jnp.abs(x)
    t = 1.0 / (1.0 + p * ax)
    poly = ((((a5 * t + a4) * t + a3) * t + a2) * t + a1) * t
    y = 1.0 - poly * jnp.exp(-ax * ax)
    return jnp.where(x >= 0, y, -y)


def _gelu_erf(x):
    # gelu(x) = x * 0.5 * (1 + erf(x / sqrt(2)))  (exact-erf BERT gelu)
    return x * 0.5 * (1.0 + _erf_approx(x * (1.0 / math.sqrt(2.0))))


_SQRT_2_OVER_PI = math.sqrt(2.0 / math.pi)


def _gelu_tanh(x):
    # tanh goes to the EUP slot (near-free vs the VALU-heavy erf polynomial);
    # differs from exact-erf gelu by ~1e-3.
    return 0.5 * x * (1.0 + jnp.tanh(_SQRT_2_OVER_PI * (x + 0.044715 * x * x * x)))


def _layer_norm(h, gamma, beta):
    mean = jnp.mean(h, axis=-1, keepdims=True)
    c = h - mean
    var = jnp.mean(c * c, axis=-1, keepdims=True)
    return c * jax.lax.rsqrt(var + LAYER_NORM_EPS) * gamma + beta


# ----------------------------------------------------------------------------
# Kernel 1: K/V projection, head-major output (N, H, L, Dh).
# Grid: (batch, seq-tile).  Each per-head matmul keeps a D-deep contraction.
# ----------------------------------------------------------------------------
def _kv_kernel(x_ref, wkv_ref, bkv_ref, k_ref, v_ref, *, num_heads):
    x = x_ref[0]                                            # (TL, D) compute dtype
    for hd in range(num_heads):
        k_h = jnp.dot(x, wkv_ref[0, hd], preferred_element_type=jnp.float32)
        k_h = k_h + bkv_ref[0, hd].astype(jnp.float32)
        v_h = jnp.dot(x, wkv_ref[1, hd], preferred_element_type=jnp.float32)
        v_h = v_h + bkv_ref[1, hd].astype(jnp.float32)
        k_ref[0, hd] = k_h.astype(k_ref.dtype)              # free leading-axis store
        v_ref[0, hd] = v_h.astype(v_ref.dtype)


def _kv_proj(x, wkv, bkv, *, num_heads, tl, compute_dtype):
    n, seq, d = x.shape
    dh = d // num_heads
    kernel = functools.partial(_kv_kernel, num_heads=num_heads)
    kv_out = pl.BlockSpec((1, num_heads, tl, dh), lambda b, i: (b, 0, i, 0))
    return pl.pallas_call(
        kernel,
        out_shape=tuple(jax.ShapeDtypeStruct((n, num_heads, seq, dh), compute_dtype)
                        for _ in range(2)),
        grid_spec=pltpu.PrefetchScalarGridSpec(
            num_scalar_prefetch=0,
            grid=(n, seq // tl),
            in_specs=[
                pl.BlockSpec((1, tl, d), lambda b, i: (b, i, 0)),
                _const_spec((2, num_heads, d, dh), lambda b, i: (0, 0, 0, 0)),
                _const_spec((2, num_heads, 1, dh), lambda b, i: (0, 0, 0, 0)),
            ],
            out_specs=(kv_out, kv_out),
        ),
        compiler_params=_compiler_params(("parallel", "parallel")),
    )(x, wkv, bkv)


# ----------------------------------------------------------------------------
# Kernel 2: fused Q projection + attention core + BertSelfOutput
# (dense + residual + LayerNorm).  Grid: (batch, query-tile).
# Mask stays un-broadcast at (1, L).
# ----------------------------------------------------------------------------
def _attn_kernel(x_ref, k_ref, v_ref, mask_ref, wq_ref, bq_ref, wo_ref, bo_ref,
                 gamma_ref, beta_ref, out_ref, *, num_heads, compute_dtype,
                 approx_recip):
    x = x_ref[0]                                            # (TQ, D) compute dtype
    mask = mask_ref[0].astype(jnp.float32)                  # (1, L) additive key mask

    # Unrolled head loop: the (TQ, L) f32 softmax temporaries are dead at the
    # end of each iteration; only the (TQ, Dh) f32 contexts survive.
    # TODO(synk): for very large H switch to lax.fori_loop + a VMEM ctx slab to
    # bound vreg pressure.
    ctx_parts = []
    for hd in range(num_heads):
        # Fused Q projection from the resident x tile (Wq/bq pre-scaled by
        # 1/sqrt(Dh) at pack time) -- Q never round-trips through HBM.
        q_h = jnp.dot(x, wq_ref[hd], preferred_element_type=jnp.float32)
        q_h = (q_h + bq_ref[hd].astype(jnp.float32)).astype(compute_dtype)

        k_h = k_ref[0, hd]                                  # (L, Dh) free leading index
        s = jax.lax.dot_general(q_h, k_h, (((1,), (1,)), ((), ())),
                                preferred_element_type=jnp.float32)   # (TQ, L)
        s = s + mask

        # numerically-stable softmax in f32 (attention dropout = identity)
        m = jnp.max(s, axis=-1, keepdims=True)
        e = jnp.exp(s - m)
        denom = jnp.sum(e, axis=-1, keepdims=True)
        probs = e * pl.reciprocal(denom, approx=approx_recip)

        ctx_parts.append(jnp.dot(probs.astype(compute_dtype), v_ref[0, hd],
                                 preferred_element_type=jnp.float32))  # (TQ, Dh)

    # One lane-dense context slab + a single D-deep output projection:
    # concat_h(ctx_h) @ Wo == sum_h ctx_h @ Wo[h*Dh:(h+1)*Dh, :]
    ctx = jnp.concatenate(ctx_parts, axis=-1).astype(compute_dtype)    # (TQ, D)
    h_out = jnp.dot(ctx, wo_ref[...], preferred_element_type=jnp.float32)
    h_out = h_out + bo_ref[...].astype(jnp.float32) + x.astype(jnp.float32)

    out_ref[0] = _layer_norm(h_out,
                             gamma_ref[...].astype(jnp.float32),
                             beta_ref[...].astype(jnp.float32)).astype(out_ref.dtype)


def _attention(x, k, v, add_mask, wq, bq, wo, bo, gamma, beta, *,
               num_heads, tq, compute_dtype, approx_recip):
    n, seq, d = x.shape
    dh = d // num_heads
    kernel = functools.partial(_attn_kernel, num_heads=num_heads,
                               compute_dtype=compute_dtype,
                               approx_recip=approx_recip)
    xblk = pl.BlockSpec((1, tq, d), lambda b, qi: (b, qi, 0))
    # K/V blocks are grid-invariant across all query tiles of a batch element.
    # TODO(synk): for very long L on v7x (64 MiB VMEM) add a key-tile grid axis
    # (flash-style) instead of keeping the full (H, L, Dh) K/V blocks resident.
    kvblk = pl.BlockSpec((1, num_heads, seq, dh), lambda b, qi: (b, 0, 0, 0))
    return pl.pallas_call(
        kernel,
        out_shape=jax.ShapeDtypeStruct((n, seq, d), compute_dtype),
        grid_spec=pltpu.PrefetchScalarGridSpec(
            num_scalar_prefetch=0,
            grid=(n, seq // tq),
            in_specs=[
                xblk,                                                # residual x tile
                kvblk,                                               # K head-major
                kvblk,                                               # V head-major
                pl.BlockSpec((1, 1, seq), lambda b, qi: (b, 0, 0)),  # (N,1,L) mask
                _const_spec((num_heads, d, dh), lambda b, qi: (0, 0, 0)),  # Wq*1/sqrt(Dh)
                _const_spec((num_heads, 1, dh), lambda b, qi: (0, 0, 0)),  # bq*1/sqrt(Dh)
                _const_spec((d, d), lambda b, qi: (0, 0)),                 # Wo
                _const_spec((d,), lambda b, qi: (0,)),                     # bo
                _const_spec((d,), lambda b, qi: (0,)),                     # ln1 gamma
                _const_spec((d,), lambda b, qi: (0,)),                     # ln1 beta
            ],
            out_specs=xblk,
        ),
        compiler_params=_compiler_params(("parallel", "parallel")),
    )(x, k, v, add_mask, wq, bq, wo, bo, gamma, beta)


# ----------------------------------------------------------------------------
# Kernel 3: BertIntermediate (dense + gelu) + BertOutput (dense + res + LN).
# ----------------------------------------------------------------------------
def _ffn_kernel(x_ref, w1_ref, b1_ref, w2_ref, b2_ref, gamma_ref, beta_ref,
                out_ref, *, compute_dtype, use_tanh_gelu):
    x = x_ref[...]                                          # (TR, D) compute dtype
    x32 = x.astype(jnp.float32)
    h = jnp.dot(x, w1_ref[...], preferred_element_type=jnp.float32)
    h = h + b1_ref[...].astype(jnp.float32)
    h = _gelu_tanh(h) if use_tanh_gelu else _gelu_erf(h)    # (TR, DI) f32
    y = jnp.dot(h.astype(compute_dtype), w2_ref[...],
                preferred_element_type=jnp.float32)
    y = y + b2_ref[...].astype(jnp.float32) + x32
    out_ref[...] = _layer_norm(y,
                               gamma_ref[...].astype(jnp.float32),
                               beta_ref[...].astype(jnp.float32)).astype(out_ref.dtype)


def _ffn(x2d, w1, b1, w2, b2, gamma, beta, *, tr, compute_dtype, use_tanh_gelu):
    nl, d = x2d.shape
    di = w1.shape[1]
    kernel = functools.partial(_ffn_kernel, compute_dtype=compute_dtype,
                               use_tanh_gelu=use_tanh_gelu)
    return pl.pallas_call(
        kernel,
        out_shape=jax.ShapeDtypeStruct((nl, d), compute_dtype),
        grid_spec=pltpu.PrefetchScalarGridSpec(
            num_scalar_prefetch=0,
            grid=(nl // tr,),
            in_specs=[
                pl.BlockSpec((tr, d), lambda i: (i, 0)),
                _const_spec((d, di), lambda i: (0, 0)),
                _const_spec((di,), lambda i: (0,)),
                _const_spec((di, d), lambda i: (0, 0)),
                _const_spec((d,), lambda i: (0,)),
                _const_spec((d,), lambda i: (0,)),
                _const_spec((d,), lambda i: (0,)),
            ],
            out_specs=pl.BlockSpec((tr, d), lambda i: (i, 0)),
        ),
        compiler_params=_compiler_params(("parallel",)),
    )(x2d, w1, b1, w2, b2, gamma, beta)


# ----------------------------------------------------------------------------
# One-time parameter packing (call once, outside the forward).
# ----------------------------------------------------------------------------
def _head_major(w, num_heads):
    d_in, d_out = w.shape
    dh = d_out // num_heads
    return w.reshape(d_in, num_heads, dh).transpose(1, 0, 2)       # (H, D, Dh)


def pack_layer_params(p, num_heads, compute_dtype):
    d = p["wq"].shape[0]
    dh = d // num_heads
    scale = 1.0 / math.sqrt(dh)
    cdt = compute_dtype
    wq = _head_major(p["wq"] * scale, num_heads).astype(cdt)        # (H, D, Dh)
    bq = (p["bq"] * scale).reshape(num_heads, 1, dh).astype(jnp.float32)
    wkv = jnp.stack([_head_major(p["wk"], num_heads),
                     _head_major(p["wv"], num_heads)], axis=0).astype(cdt)  # (2,H,D,Dh)
    bkv = jnp.stack([p["bk"].reshape(num_heads, 1, dh),
                     p["bv"].reshape(num_heads, 1, dh)], axis=0).astype(jnp.float32)
    return {
        "wq": wq, "bq": bq, "wkv": wkv, "bkv": bkv,
        "wo": p["wo"].astype(cdt), "bo": p["bo"].astype(jnp.float32),
        "ln1_g": p["ln1_gamma"].astype(jnp.float32),
        "ln1_b": p["ln1_beta"].astype(jnp.float32),
        "wi": p["wi"].astype(cdt), "bi": p["bi"].astype(jnp.float32),
        "wo2": p["wo2"].astype(cdt), "bo2": p["bo2"].astype(jnp.float32),
        "ln2_g": p["ln2_gamma"].astype(jnp.float32),
        "ln2_b": p["ln2_beta"].astype(jnp.float32),
    }


def pack_params(layer_params, num_heads, compute_dtype=jnp.bfloat16):
    return [pack_layer_params(p, num_heads, compute_dtype) for p in layer_params]


# ----------------------------------------------------------------------------
# BertLayer + GlobalVisualEncoder wrappers.
# ----------------------------------------------------------------------------
def _bert_layer(x, add_mask, p, *, num_heads, tq, tkv, tr, compute_dtype,
                approx_recip, use_tanh_gelu):
    n, seq, d = x.shape
    k, v = _kv_proj(x, p["wkv"], p["bkv"], num_heads=num_heads, tl=tkv,
                    compute_dtype=compute_dtype)
    attn_out = _attention(x, k, v, add_mask, p["wq"], p["bq"], p["wo"], p["bo"],
                          p["ln1_g"], p["ln1_b"], num_heads=num_heads, tq=tq,
                          compute_dtype=compute_dtype, approx_recip=approx_recip)
    ffn_out = _ffn(attn_out.reshape(n * seq, d), p["wi"], p["bi"], p["wo2"],
                   p["bo2"], p["ln2_g"], p["ln2_b"], tr=tr,
                   compute_dtype=compute_dtype, use_tanh_gelu=use_tanh_gelu)
    return ffn_out.reshape(n, seq, d)


def global_visual_encoder(vis_embeds, vis_masks, packed_layers, num_heads, *,
                          compute_dtype=jnp.bfloat16, approx_recip=True,
                          use_tanh_gelu=False, tq=None, tkv=None, tr=None,
                          graph_sprels=None):
    """vis_embeds: (N, L, D); vis_masks: (N, L) {0,1}.  packed_layers comes from
    pack_params() (call it once, outside the forward).  Returns (N, L, D) in
    compute_dtype."""
    # TODO(synk): graph_sprels (a dense (N,1,L,L) relative-position bias) is not
    # supported by the de-broadcast (N,1,L) mask path; pass None.
    assert graph_sprels is None
    n, seq, d = vis_embeds.shape
    assert d % num_heads == 0
    # Defaults sized for the 256-wide MXUs on v6e/v7x; on v5e (4x128^2 MXU)
    # prefer tq=128 / tr=256.
    if tq is None:
        tq = _pick_tile(seq, 256)
    if tkv is None:
        tkv = _pick_tile(seq, 256)
    if tr is None:
        tr = _pick_tile(n * seq, 512)
    assert seq % tq == 0 and seq % tkv == 0 and (n * seq) % tr == 0

    # extend_neg_masks: (N, L) key mask -> additive mask, kept un-broadcast.
    add_mask = ((1.0 - vis_masks.astype(jnp.float32)) * _NEG_INF).reshape(n, 1, seq)

    # Inter-kernel activations are carried in compute_dtype (bf16 on the fast
    # path) to halve activation HBM traffic; softmax/LayerNorm math stays f32.
    x = vis_embeds.astype(compute_dtype)
    for p in packed_layers:
        x = _bert_layer(x, add_mask, p, num_heads=num_heads, tq=tq, tkv=tkv,
                        tr=tr, compute_dtype=compute_dtype,
                        approx_recip=approx_recip, use_tanh_gelu=use_tanh_gelu)
    return x


# ----------------------------------------------------------------------------
# Pure-JAX reference of the PyTorch forward (eval mode).
# ----------------------------------------------------------------------------
def _reference_encoder(vis_embeds, vis_masks, layer_params, num_heads):
    n, seq, d = vis_embeds.shape
    h_ = num_heads
    dh = d // h_
    mask = ((1.0 - vis_masks.astype(jnp.float32)) * _NEG_INF)[:, None, None, :]

    def ln(t, g, b):
        mu = jnp.mean(t, -1, keepdims=True)
        var = jnp.mean((t - mu) ** 2, -1, keepdims=True)
        return (t - mu) / jnp.sqrt(var + LAYER_NORM_EPS) * g + b

    x = vis_embeds.astype(jnp.float32)
    for p in layer_params:
        q = x @ p["wq"] + p["bq"]
        k = x @ p["wk"] + p["bk"]
        v = x @ p["wv"] + p["bv"]
        q = q.reshape(n, seq, h_, dh).transpose(0, 2, 1, 3)
        k = k.reshape(n, seq, h_, dh).transpose(0, 2, 1, 3)
        v = v.reshape(n, seq, h_, dh).transpose(0, 2, 1, 3)
        s = jnp.einsum('nhqd,nhkd->nhqk', q, k) / math.sqrt(dh) + mask
        probs = jax.nn.softmax(s, axis=-1)
        ctx = jnp.einsum('nhqk,nhkd->nhqd', probs, v)
        ctx = ctx.transpose(0, 2, 1, 3).reshape(n, seq, d)
        attn = ln(ctx @ p["wo"] + p["bo"] + x, p["ln1_gamma"], p["ln1_beta"])
        inter = attn @ p["wi"] + p["bi"]
        inter = inter * 0.5 * (1.0 + jax.lax.erf(inter / math.sqrt(2.0)))
        x = ln(inter @ p["wo2"] + p["bo2"] + attn,
               p["ln2_gamma"], p["ln2_beta"])
    return x


if __name__ == "__main__":
    # Small config: batch=2, seq=16, hidden=256, heads=2 (head_dim=128),
    # intermediate=512, num_v_layers=2.
    N, L, D, H, DI = 2, 16, 256, 2, 512
    NUM_LAYERS = 2
    SCALE = 0.02

    key = jax.random.PRNGKey(0)

    def make_layer(k):
        ks = jax.random.split(k, 12)
        return {
            "wq": SCALE * jax.random.normal(ks[0], (D, D), jnp.float32),
            "bq": SCALE * jax.random.normal(ks[1], (D,), jnp.float32),
            "wk": SCALE * jax.random.normal(ks[2], (D, D), jnp.float32),
            "bk": SCALE * jax.random.normal(ks[3], (D,), jnp.float32),
            "wv": SCALE * jax.random.normal(ks[4], (D, D), jnp.float32),
            "bv": SCALE * jax.random.normal(ks[5], (D,), jnp.float32),
            "wo": SCALE * jax.random.normal(ks[6], (D, D), jnp.float32),
            "bo": SCALE * jax.random.normal(ks[7], (D,), jnp.float32),
            "ln1_gamma": jnp.ones((D,), jnp.float32),
            "ln1_beta": jnp.zeros((D,), jnp.float32),
            "wi": SCALE * jax.random.normal(ks[8], (D, DI), jnp.float32),
            "bi": SCALE * jax.random.normal(ks[9], (DI,), jnp.float32),
            "wo2": SCALE * jax.random.normal(ks[10], (DI, D), jnp.float32),
            "bo2": SCALE * jax.random.normal(ks[11], (D,), jnp.float32),
            "ln2_gamma": jnp.ones((D,), jnp.float32),
            "ln2_beta": jnp.zeros((D,), jnp.float32),
        }

    key, k_x, k_m, *layer_keys = jax.random.split(key, 3 + NUM_LAYERS)
    layer_params = [make_layer(k) for k in layer_keys]

    vis_embeds = jax.random.normal(k_x, (N, L, D), jnp.float32)
    vis_masks = (jax.random.uniform(k_m, (N, L)) > 0.2).astype(jnp.float32)
    vis_masks = vis_masks.at[:, 0].set(1.0)   # keep at least one visible token

    ref = _reference_encoder(vis_embeds, vis_masks, layer_params, H)

    # Exact path: f32 MXU inputs + exact reciprocal + erf gelu -> tight tol.
    packed_f32 = pack_params(layer_params, H, jnp.float32)   # packed once
    out_f32 = global_visual_encoder(
        vis_embeds, vis_masks, packed_f32, H,
        compute_dtype=jnp.float32, approx_recip=False, use_tanh_gelu=False)
    out_f32 = jax.block_until_ready(out_f32)
    np.testing.assert_allclose(np.asarray(out_f32), np.asarray(ref),
                               rtol=1e-4, atol=1e-4)

    # Fast path: bf16 MXU inputs / bf16 inter-kernel activations + approx EUP
    # reciprocal + tanh gelu.
    packed_bf16 = pack_params(layer_params, H, jnp.bfloat16)  # packed once
    out_bf16 = global_visual_encoder(
        vis_embeds, vis_masks, packed_bf16, H,
        compute_dtype=jnp.bfloat16, approx_recip=True, use_tanh_gelu=True)
    out_bf16 = jax.block_until_ready(out_bf16)
    np.testing.assert_allclose(np.asarray(out_bf16.astype(jnp.float32)),
                               np.asarray(ref), rtol=3e-2, atol=3e-2)

    print("KERNEL_OK")
</pallas_src>

<mosaic_0001>
module attributes {stable_mosaic.version = 11 : i64} {
  func.func @_copy(%arg0: i32, %arg1: memref<8x128xf32, #tpu.memory_space<vmem>>, %arg2: memref<8x128xf32, #tpu.memory_space<vmem>>) attributes {dimension_semantics = [#tpu.dimension_semantics<arbitrary>], iteration_bounds = array<i64: 1>, scalar_prefetch = 0 : i64, scratch_operands = 0 : i64, tpu.core_type = #tpu.core_type<tc>, window_params = [{pipeline_mode = #tpu.pipeline_mode<synchronous>, transform_indices = @transform_0, window_bounds = array<i64: 8, 128>}, {pipeline_mode = #tpu.pipeline_mode<synchronous>, transform_indices = @transform_1, window_bounds = array<i64: 8, 128>}]} {
    %c0 = arith.constant 0 : index
    %c0_0 = arith.constant 0 : index
    %0 = vector.load %arg1[%c0, %c0_0] : memref<8x128xf32, #tpu.memory_space<vmem>>, vector<8x128xf32>
    %c0_1 = arith.constant 0 : index
    %c0_2 = arith.constant 0 : index
    %1 = vector.load %arg2[%c0_1, %c0_2] : memref<8x128xf32, #tpu.memory_space<vmem>>, vector<8x128xf32>
    tpu.vector_store %arg2[%c0_1, %c0_2], %0 {strides = array<i32>} : memref<8x128xf32, #tpu.memory_space<vmem>>, vector<8x128xf32>,
    return
  }
  func.func @transform_0(%arg0: i32) -> (i32, i32) {
    %c0_i32 = arith.constant 0 : i32
    %c0_i32_0 = arith.constant 0 : i32
    %c0_i32_1 = arith.constant 0 : i32
    return %c0_i32, %c0_i32_0 : i32, i32
  }
  func.func @transform_1(%arg0: i32) -> (i32, i32) {
    %c0_i32 = arith.constant 0 : i32
    %c0_i32_0 = arith.constant 0 : i32
    %c0_i32_1 = arith.constant 0 : i32
    return %c0_i32, %c0_i32_0 : i32, i32
  }
}

module attributes {stable_mosaic.version = 11 : i64} {
  func.func @_kv_kernel(%arg0: i32, %arg1: i32, %arg2: memref<1x16x256xf32, #tpu.memory_space<vmem>>, %arg3: memref<2x2x256x128xf32, #tpu.memory_space<vmem>>, %arg4: memref<2x2x1x128xf32, #tpu.memory_space<vmem>>, %arg5: memref<1x2x16x128xf32, #tpu.memory_space<vmem>>, %arg6: memref<1x2x16x128xf32, #tpu.memory_space<vmem>>) attributes {dimension_semantics = [#tpu.dimension_semantics<parallel>, #tpu.dimension_semantics<parallel>], iteration_bounds = array<i64: 2, 1>, scalar_prefetch = 0 : i64, scratch_operands = 0 : i64, tpu.core_type = #tpu.core_type<tc>, window_params = [{transform_indices = @transform_0, window_bounds = array<i64: 1, 16, 256>}, {pipeline_mode = #tpu.pipeline_mode<synchronous>, transform_indices = @transform_1, window_bounds = array<i64: 2, 2, 256, 128>}, {pipeline_mode = #tpu.pipeline_mode<synchronous>, transform_indices = @transform_2, window_bounds = array<i64: 2, 2, 1, 128>}, {transform_indices = @transform_3, window_bounds = array<i64: 1, 2, 16, 128>}, {transform_indices = @transform_4, window_bounds = array<i64: 1, 2, 16, 128>}]} {
    %c0 = arith.constant 0 : index
    %c0_0 = arith.constant 0 : index
    %c0_1 = arith.constant 0 : index
    %0 = vector.load %arg2[%c0, %c0_0, %c0_1] : memref<1x16x256xf32, #tpu.memory_space<vmem>>, vector<1x16x256xf32>
    %1 = vector.shape_cast %0 : vector<1x16x256xf32> to vector<16x256xf32>
    %c0_2 = arith.constant 0 : index
    %c0_3 = arith.constant 0 : index
    %c0_4 = arith.constant 0 : index
    %c0_5 = arith.constant 0 : index
    %2 = vector.load %arg3[%c0_2, %c0_3, %c0_4, %c0_5] : memref<2x2x256x128xf32, #tpu.memory_space<vmem>>, vector<1x1x256x128xf32>
    %3 = vector.shape_cast %2 : vector<1x1x256x128xf32> to vector<256x128xf32>
    %cst = arith.constant dense<0.000000e+00> : vector<16x128xf32>
    %4 = tpu.matmul %1, %3, %cst {dimension_numbers = #tpu.dot_dimension_numbers<[1], [0], [0], [1], [0, 0, 1, 1], [], []>} : vector<16x256xf32>, vector<256x128xf32>, vector<16x128xf32> -> vector<16x128xf32>
    %c0_6 = arith.constant 0 : index
    %c0_7 = arith.constant 0 : index
    %c0_8 = arith.constant 0 : index
    %c0_9 = arith.constant 0 : index
    %5 = vector.load %arg4[%c0_6, %c0_7, %c0_8, %c0_9] : memref<2x2x1x128xf32, #tpu.memory_space<vmem>>, vector<1x1x1x128xf32>
    %6 = vector.shape_cast %5 : vector<1x1x1x128xf32> to vector<1x128xf32>
    %7 = vector.broadcast %6 : vector<1x128xf32> to vector<16x128xf32>
    %8 = arith.addf %4, %7 : vector<16x128xf32>
    %c1 = arith.constant 1 : index
    %c0_10 = arith.constant 0 : index
    %c0_11 = arith.constant 0 : index
    %c0_12 = arith.constant 0 : index
    %9 = vector.load %arg3[%c1, %c0_10, %c0_11, %c0_12] : memref<2x2x256x128xf32, #tpu.memory_space<vmem>>, vector<1x1x256x128xf32>
    %10 = vector.shape_cast %9 : vector<1x1x256x128xf32> to vector<256x128xf32>
    %cst_13 = arith.constant dense<0.000000e+00> : vector<16x128xf32>
    %11 = tpu.matmul %1, %10, %cst_13 {dimension_numbers = #tpu.dot_dimension_numbers<[1], [0], [0], [1], [0, 0, 1, 1], [], []>} : vector<16x256xf32>, vector<256x128xf32>, vector<16x128xf32> -> vector<16x128xf32>
    %c1_14 = arith.constant 1 : index
    %c0_15 = arith.constant 0 : index
    %c0_16 = arith.constant 0 : index
    %c0_17 = arith.constant 0 : index
    %12 = vector.load %arg4[%c1_14, %c0_15, %c0_16, %c0_17] : memref<2x2x1x128xf32, #tpu.memory_space<vmem>>, vector<1x1x1x128xf32>
    %13 = vector.shape_cast %12 : vector<1x1x1x128xf32> to vector<1x128xf32>
    %14 = vector.broadcast %13 : vector<1x128xf32> to vector<16x128xf32>
    %15 = arith.addf %11, %14 : vector<16x128xf32>
    %c0_18 = arith.constant 0 : index
    %c0_19 = arith.constant 0 : index
    %c0_20 = arith.constant 0 : index
    %c0_21 = arith.constant 0 : index
    %16 = vector.load %arg5[%c0_18, %c0_19, %c0_20, %c0_21] : memref<1x2x16x128xf32, #tpu.memory_space<vmem>>, vector<1x1x16x128xf32>
    %17 = vector.shape_cast %16 : vector<1x1x16x128xf32> to vector<16x128xf32>
    %18 = vector.shape_cast %8 : vector<16x128xf32> to vector<1x1x16x128xf32>
    tpu.vector_store %arg5[%c0_18, %c0_19, %c0_20, %c0_21], %18 {strides = array<i32>} : memref<1x2x16x128xf32, #tpu.memory_space<vmem>>, vector<1x1x16x128xf32>,
    %c0_22 = arith.constant 0 : index
    %c0_23 = arith.constant 0 : index
    %c0_24 = arith.constant 0 : index
    %c0_25 = arith.constant 0 : index
    %19 = vector.load %arg6[%c0_22, %c0_23, %c0_24, %c0_25] : memref<1x2x16x128xf32, #tpu.memory_space<vmem>>, vector<1x1x16x128xf32>
    %20 = vector.shape_cast %19 : vector<1x1x16x128xf32> to vector<16x128xf32>
    %21 = vector.shape_cast %15 : vector<16x128xf32> to vector<1x1x16x128xf32>
    tpu.vector_store %arg6[%c0_22, %c0_23, %c0_24, %c0_25], %21 {strides = array<i32>} : memref<1x2x16x128xf32, #tpu.memory_space<vmem>>, vector<1x1x16x128xf32>,
    %c0_26 = arith.constant 0 : index
    %c1_27 = arith.constant 1 : index
    %c0_28 = arith.constant 0 : index
    %c0_29 = arith.constant 0 : index
    %22 = vector.load %arg3[%c0_26, %c1_27, %c0_28, %c0_29] : memref<2x2x256x128xf32, #tpu.memory_space<vmem>>, vector<1x1x256x128xf32>
    %23 = vector.shape_cast %22 : vector<1x1x256x128xf32> to vector<256x128xf32>
    %cst_30 = arith.constant dense<0.000000e+00> : vector<16x128xf32>
    %24 = tpu.matmul %1, %23, %cst_30 {dimension_numbers = #tpu.dot_dimension_numbers<[1], [0], [0], [1], [0, 0, 1, 1], [], []>} : vector<16x256xf32>, vector<256x128xf32>, vector<16x128xf32> -> vector<16x128xf32>
    %c0_31 = arith.constant 0 : index
    %c1_32 = arith.constant 1 : index
    %c0_33 = arith.constant 0 : index
    %c0_34 = arith.constant 0 : index
    %25 = vector.load %arg4[%c0_31, %c1_32, %c0_33, %c0_34] : memref<2x2x1x128xf32, #tpu.memory_space<vmem>>, vector<1x1x1x128xf32>
    %26 = vector.shape_cast %25 : vector<1x1x1x128xf32> to vector<1x128xf32>
    %27 = vector.broadcast %26 : vector<1x128xf32> to vector<16x128xf32>
    %28 = arith.addf %24, %27 : vector<16x128xf32>
    %c1_35 = arith.constant 1 : index
    %c1_36 = arith.constant 1 : index
    %c0_37 = arith.constant 0 : index
    %c0_38 = arith.constant 0 : index
    %29 = vector.load %arg3[%c1_35, %c1_36, %c0_37, %c0_38] : memref<2x2x256x128xf32, #tpu.memory_space<vmem>>, vector<1x1x256x128xf32>
    %30 = vector.shape_cast %29 : vector<1x1x256x128xf32> to vector<256x128xf32>
    %cst_39 = arith.constant dense<0.000000e+00> : vector<16x128xf32>
    %31 = tpu.matmul %1, %30, %cst_39 {dimension_numbers = #tpu.dot_dimension_numbers<[1], [0], [0], [1], [0, 0, 1, 1], [], []>} : vector<16x256xf32>, vector<256x128xf32>, vector<16x128xf32> -> vector<16x128xf32>
    %c1_40 = arith.constant 1 : index
    %c1_41 = arith.constant 1 : index
    %c0_42 = arith.constant 0 : index
    %c0_43 = arith.constant 0 : index
    %32 = vector.load %arg4[%c1_40, %c1_41, %c0_42, %c0_43] : memref<2x2x1x128xf32, #tpu.memory_space<vmem>>, vector<1x1x1x128xf32>
    %33 = vector.shape_cast %32 : vector<1x1x1x128xf32> to vector<1x128xf32>
    %34 = vector.broadcast %33 : vector<1x128xf32> to vector<16x128xf32>
    %35 = arith.addf %31, %34 : vector<16x128xf32>
    %c0_44 = arith.constant 0 : index
    %c1_45 = arith.constant 1 : index
    %c0_46 = arith.constant 0 : index
    %c0_47 = arith.constant 0 : index
    %36 = vector.load %arg5[%c0_44, %c1_45, %c0_46, %c0_47] : memref<1x2x16x128xf32, #tpu.memory_space<vmem>>, vector<1x1x16x128xf32>
    %37 = vector.shape_cast %36 : vector<1x1x16x128xf32> to vector<16x128xf32>
    %38 = vector.shape_cast %28 : vector<16x128xf32> to vector<1x1x16x128xf32>
    tpu.vector_store %arg5[%c0_44, %c1_45, %c0_46, %c0_47], %38 {strides = array<i32>} : memref<1x2x16x128xf32, #tpu.memory_space<vmem>>, vector<1x1x16x128xf32>,
    %c0_48 = arith.constant 0 : index
    %c1_49 = arith.constant 1 : index
    %c0_50 = arith.constant 0 : index
    %c0_51 = arith.constant 0 : index
    %39 = vector.load %arg6[%c0_48, %c1_49, %c0_50, %c0_51] : memref<1x2x16x128xf32, #tpu.memory_space<vmem>>, vector<1x1x16x128xf32>
    %40 = vector.shape_cast %39 : vector<1x1x16x128xf32> to vector<16x128xf32>
    %41 = vector.shape_cast %35 : vector<16x128xf32> to vector<1x1x16x128xf32>
    tpu.vector_store %arg6[%c0_48, %c1_49, %c0_50, %c0_51], %41 {strides = array<i32>} : memref<1x2x16x128xf32, #tpu.memory_space<vmem>>, vector<1x1x16x128xf32>,
    return
  }
  func.func @transform_0(%arg0: i32, %arg1: i32) -> (i32, i32, i32) {
    %c0_i32 = arith.constant 0 : i32
    %c0_i32_0 = arith.constant 0 : i32
    return %arg0, %arg1, %c0_i32 : i32, i32, i32
  }
  func.func @transform_1(%arg0: i32, %arg1: i32) -> (i32, i32, i32, i32) {
    %c0_i32 = arith.constant 0 : i32
    %c0_i32_0 = arith.constant 0 : i32
    %c0_i32_1 = arith.constant 0 : i32
    %c0_i32_2 = arith.constant 0 : i32
    %c0_i32_3 = arith.constant 0 : i32
    return %c0_i32, %c0_i32_0, %c0_i32_1, %c0_i32_2 : i32, i32, i32, i32
  }
  func.func @transform_2(%arg0: i32, %arg1: i32) -> (i32, i32, i32, i32) {
    %c0_i32 = arith.constant 0 : i32
    %c0_i32_0 = arith.constant 0 : i32
    %c0_i32_1 = arith.constant 0 : i32
    %c0_i32_2 = arith.constant 0 : i32
    %c0_i32_3 = arith.constant 0 : i32
    return %c0_i32, %c0_i32_0, %c0_i32_1, %c0_i32_2 : i32, i32, i32, i32
  }
  func.func @transform_3(%arg0: i32, %arg1: i32) -> (i32, i32, i32, i32) {
    %c0_i32 = arith.constant 0 : i32
    %c0_i32_0 = arith.constant 0 : i32
    %c0_i32_1 = arith.constant 0 : i32
    return %arg0, %c0_i32, %arg1, %c0_i32_0 : i32, i32, i32, i32
  }
  func.func @transform_4(%arg0: i32, %arg1: i32) -> (i32, i32, i32, i32) {
    %c0_i32 = arith.constant 0 : i32
    %c0_i32_0 = arith.constant 0 : i32
    %c0_i32_1 = arith.constant 0 : i32
    return %arg0, %c0_i32, %arg1, %c0_i32_0 : i32, i32, i32, i32
  }
}

</mosaic_0001>

<llo_original>
// kernel: tpu_custom_call.1
$region0: #{tpu_custom_call.1}
  #allocation0 [shape = 'u32[]', space=smem, size = 0x4, offset = 0x4, fixed_abs, tag = 'smem constant byte address 0x4 - core index']
  #allocation1 [shape = 'u32[72,128]{1,0:T(1,128)}', space=vmem, size = 0x9000, scoped, tag = 'internal scratch']
  %s0 = inlined_call_operand.hbm [shape: f32[8,128], index: 0, kind: input, shape index: {}]
  %s1 = inlined_call_operand.hbm [shape: f32[8,128], index: 1, kind: output, shape index: {}]
  %s2 = sld [smem:[#allocation0]]
  $region18: #{tpu_custom_call.1} parent=0
    _
  %s4 = ssub.s32 1, %s2
  %s5 = scalar_select 0, %s4, %s2
  $region1: #{tpu_custom_call.1} parent=0
    #allocation2 [shape = 'u8[4096]{0}', space=vmem, size = 0x1000, scoped, tag = 'input window, operand 0, single buffered']
    #allocation3 [shape = 's32[1]{0}', space=sflag, size = 0x4, scoped, tag = 'scoped memory for tpu_custom_call.1']
    #allocation4 [shape = 's32[1]{0}', space=sflag, size = 0x4, scoped, tag = 'scoped memory for tpu_custom_call.1']
    #allocation5 [shape = 'u8[4096]{0}', space=vmem, size = 0x1000, scoped, tag = 'output window, operand 0, single buffered']
    %6 = vsyncpa [#allocation3], 0
    %7 = vsyncpa [#allocation4], 0
    // Predicated region
    $region2: #{tpu_custom_call.1} parent=1 // pred_check
      _
    $region3: #{tpu_custom_call.1} parent=1 // pred_check_branch
      %9 = sbr.rel (0) target = $region5
    $region4: #{tpu_custom_call.1} parent=1 // pred_region
      %11 = vsyncadd [#allocation3], 0
      %s13 = sshll.u32 %s0, 4
      %s14 = int_to_ptr.hbm [resolvable:$true] %s13
      %s15 = sshll.u32 [#allocation2], 4
      %s16 = int_to_ptr.vmem [resolvable:$true] %s15
      %18 = dma.hbm_to_vmem [thread:$0]  %s14, 128, %s16, [#allocation3]
    $region5: #{tpu_custom_call.1} parent=1 // pred_fallthru
      _
    // Predicated region
    $region6: #{tpu_custom_call.1} parent=1 // pred_check
      _
    $region7: #{tpu_custom_call.1} parent=1 // pred_check_branch
      %20 = sbr.rel (0) target = $region9
    $region8: #{tpu_custom_call.1} parent=1 // pred_region
      %22 = dma.done [#allocation3], 128
    $region9: #{tpu_custom_call.1} parent=1 // pred_fallthru
      _
    %v23 = vld [vmem:[#allocation2] sm:$0xff]
    %24 = vst [vmem:[#allocation5] sm:$0xff] %v23
    // Predicated region
    $region10: #{tpu_custom_call.1} parent=1 // pred_check
      _
    $region11: #{tpu_custom_call.1} parent=1 // pred_check_branch
      %26 = sbr.rel (0) target = $region13
    $region12: #{tpu_custom_call.1} parent=1 // pred_region
      %28 = vsyncadd [#allocation4], 0
      %s30 = sshll.u32 [#allocation5], 4
      %s31 = int_to_ptr.vmem [resolvable:$true] %s30
      %s32 = sshll.u32 %s1, 4
      %s33 = int_to_ptr.hbm [resolvable:$true] %s32
      %35 = dma.vmem_to_hbm [thread:$0]  %s31, 128, %s33, [#allocation4]
    $region13: #{tpu_custom_call.1} parent=1 // pred_fallthru
      _
    // Predicated region
    $region14: #{tpu_custom_call.1} parent=1 // pred_check
      _
    $region15: #{tpu_custom_call.1} parent=1 // pred_check_branch
      %37 = sbr.rel (0) target = $region17
    $region16: #{tpu_custom_call.1} parent=1 // pred_region
      %39 = dma.done [#allocation4], 128
    $region17: #{tpu_custom_call.1} parent=1 // pred_fallthru
      _
    %40 = vsyncpa [#allocation3], 1
    %41 = vsyncpa [#allocation4], 1

// kernel: tpu_custom_call.1
$region0: #{tpu_custom_call.1}
  #allocation0 [shape = 'u32[]', space=smem, size = 0x4, offset = 0x4, fixed_abs, tag = 'smem constant byte address 0x4 - core index']
  #allocation1 [shape = 'u32[72,128]{1,0:T(1,128)}', space=vmem, size = 0x9000, scoped, tag = 'internal scratch']
  %s0 = inlined_call_operand.hbm [shape: f32[2,16,256], index: 0, kind: input, shape index: {}]
  %s1 = inlined_call_operand.hbm [shape: f32[2,2,256,128], index: 1, kind: input, shape index: {}]
  %s2 = inlined_call_operand.hbm [shape: f32[2,2,1,128], index: 2, kind: input, shape index: {}]
  %s3 = inlined_call_operand.hbm [shape: f32[2,2,16,128], index: 3, kind: output, shape index: {0}]
  %s4 = inlined_call_operand.hbm [shape: f32[2,2,16,128], index: 4, kind: output, shape index: {1}]
  %5 = xla_tuple %s3, %s4
  %s6 = sld [smem:[#allocation0]]
  $region65: #{tpu_custom_call.1} parent=0
    _
  %s8 = ssub.s32 1, %s6
  %s9 = scalar_select 0, %s8, %s6
  $region1: #{tpu_custom_call.1} parent=0
    #allocation2 [shape = 'u8[32768]{0}', space=vmem, size = 0x8000, scoped, tag = 'input window, operand 0']
    #allocation3 [shape = 's32[2]{0}', space=sflag, size = 0x8, scoped, tag = 'scoped memory for tpu_custom_call.1']
    #allocation4 [shape = 's32[2]{0}', space=sflag, size = 0x8, scoped, tag = 'scoped memory for tpu_custom_call.1']
    #allocation5 [shape = 'u8[524288]{0}', space=vmem, size = 0x80000, scoped, tag = 'input window, operand 1, single buffered']
    #allocation6 [shape = 's32[1]{0}', space=sflag, size = 0x4, scoped, tag = 'scoped memory for tpu_custom_call.1']
    #allocation7 [shape = 'u8[2048]{0}', space=vmem, size = 0x800, scoped, tag = 'input window, operand 2, single buffered']
    #allocation8 [shape = 'u8[32768]{0}', space=vmem, size = 0x8000, scoped, tag = 'output window, operand 0']
    #allocation9 [shape = 'u8[32768]{0}', space=vmem, size = 0x8000, scoped, tag = 'output window, operand 1']
    #allocation10 [shape = 's32[2]{0}', space=sflag, size = 0x8, scoped, tag = 'scoped memory for tpu_custom_call.1']
    %10 = vsyncpa [#allocation3], 0
    %s11 = scalar_lea.sflag [#allocation3], 1
    %12 = vsyncpa %s11, 0
    %13 = vsyncpa [#allocation6], 0
    %14 = vsyncpa [#allocation4], 0
    %s15 = scalar_lea.sflag [#allocation4], 1
    %16 = vsyncpa %s15, 0
    %17 = vsyncpa [#allocation10], 0
    %s18 = scalar_lea.sflag [#allocation10], 1
    %19 = vsyncpa %s18, 0
    loop: start=0, step=1, limit=4
    $region2: #{tpu_custom_call.1} parent=1 // loop_pre_header
      _
    $region3: #{tpu_custom_call.1} parent=1 // loop_header
      %s21 = sphi 0, %s25
      %p22 = scmp.ge.s32.totalorder %s21, 4
      %s28 = sphi 0, %s40
      %s29 = sphi 0, %s36
      %s30 = sphi 0, %s28
      %s31 = sphi 0, %s29
      %s32 = sphi 0, %s30
      %s33 = sphi 0, %s31
      %s45 = sphi 0, %s47
      %s48 = sphi 0, %s45
      %s49 = sphi 0, %s48
      %s65 = sphi 0, %s49
      %s69 = sphi 0, %s69
      %s71 = sphi 0, %s69
      %s72 = sphi 0, %s71
      %s86 = sphi 0, %s72
      %s90 = sphi 0, %s90
      %s92 = sphi 0, %s90
      %s93 = sphi 0, %s92
      %s107 = sphi 0, %s93
      %s115 = sphi 0, %s117
      %s118 = sphi 0, %s115
      %s119 = sphi 0, %s118
      %s135 = sphi 0, %s119
      %s143 = sphi 0, %s145
      %s146 = sphi 0, %s143
      %s147 = sphi 0, %s146
      %s163 = sphi 0, %s147
    $region4: #{tpu_custom_call.1} parent=1 // loop_header_branch
      %24 = sbr.rel (%p22) target = $region8
    $region5: #{tpu_custom_call.1} parent=1 // loop_body
      %s26 = ssub.s32 %s21, 1
      %s27 = ssub.s32 %s21, 2
      %s34 = sadd.s32 1, %s29
      %p35 = scmp.ge.s32.totalorder %s34, 1
      %s36 = scalar_select %p35, 0, %s34
      %s37 = sadd.s32 1, %s28
      %s38 = scalar_select %p35, %s37, %s28
      %p39 = scmp.ge.s32.totalorder %s38, 2
      %s40 = scalar_select %p39, 0, %s38
      %s41 = ssub.s32 %s28, %s40
      %s42 = ssub.s32 %s29, %s36
      %s43 = sor.u32 %s41, %s42
      %p44 = scmp.eq.s32.totalorder %s43, 0
      %s46 = sadd.s32 %s45, 1
      %s47 = scalar_select %p44, %s45, %s46
      %p50 = pneg %p44
      %p51 = scmp.eq.s32.totalorder %s21, 1
      %p52 = por %p50, %p51
      %p53 = scmp.ne.s32.totalorder %s45, %s48
      %p54 = scmp.eq.s32.totalorder %s21, 0
      %p55 = por %p53, %p54
      %p56 = scmp.ne.s32.totalorder %s45, %s48
      %p57 = scmp.eq.s32.totalorder %s26, 1
      %p58 = por %p56, %p57
      %p59 = scmp.ne.s32.totalorder %s48, %s49
      %p60 = scmp.eq.s32.totalorder %s26, 0
      %p61 = por %p59, %p60
      %p62 = scmp.ne.s32.totalorder %s48, %s49
      %p63 = scmp.eq.s32.totalorder %s27, 1
      %p64 = por %p62, %p63
      %p66 = scmp.ne.s32.totalorder %s49, %s65
      %p67 = scmp.eq.s32.totalorder %s27, 0
      %p68 = por %p66, %p67
      %s70 = sadd.s32 %s69, 1
      %p73 = scmp.eq.s32.totalorder %s21, 1
      %p74 = scmp.ne.s32.totalorder %s69, %s71
      %p75 = scmp.eq.s32.totalorder %s21, 0
      %p76 = por %p74, %p75
      %p77 = scmp.ne.s32.totalorder %s69, %s71
      %p78 = scmp.eq.s32.totalorder %s26, 1
      %p79 = por %p77, %p78
      %p80 = scmp.ne.s32.totalorder %s71, %s72
      %p81 = scmp.eq.s32.totalorder %s26, 0
      %p82 = por %p80, %p81
      %p83 = scmp.ne.s32.totalorder %s71, %s72
      %p84 = scmp.eq.s32.totalorder %s27, 1
      %p85 = por %p83, %p84
      %p87 = scmp.ne.s32.totalorder %s72, %s86
      %p88 = scmp.eq.s32.totalorder %s27, 0
      %p89 = por %p87, %p88
      %s91 = sadd.s32 %s90, 1
      %p94 = scmp.eq.s32.totalorder %s21, 1
      %p95 = scmp.ne.s32.totalorder %s90, %s92
      %p96 = scmp.eq.s32.totalorder %s21, 0
      %p97 = por %p95, %p96
      %p98 = scmp.ne.s32.totalorder %s90, %s92
      %p99 = scmp.eq.s32.totalorder %s26, 1
      %p100 = por %p98, %p99
      %p101 = scmp.ne.s32.totalorder %s92, %s93
      %p102 = scmp.eq.s32.totalorder %s26, 0
      %p103 = por %p101, %p102
      %p104 = scmp.ne.s32.totalorder %s92, %s93
      %p105 = scmp.eq.s32.totalorder %s27, 1
      %p106 = por %p104, %p105
      %p108 = scmp.ne.s32.totalorder %s93, %s107
      %p109 = scmp.eq.s32.totalorder %s27, 0
      %p110 = por %p108, %p109
      %s111 = ssub.s32 %s28, %s40
      %s112 = ssub.s32 %s29, %s36
      %s113 = sor.u32 %s111, %s112
      %p114 = scmp.eq.s32.totalorder %s113, 0
      %s116 = sadd.s32 %s115, 1
      %s117 = scalar_select %p114, %s115, %s116
      %p120 = pneg %p114
      %p121 = scmp.eq.s32.totalorder %s21, 1
      %p122 = por %p120, %p121
      %p123 = scmp.ne.s32.totalorder %s115, %s118
      %p124 = scmp.eq.s32.totalorder %s21, 0
      %p125 = por %p123, %p124
      %p126 = scmp.ne.s32.totalorder %s115, %s118
      %p127 = scmp.eq.s32.totalorder %s26, 1
      %p128 = por %p126, %p127
      %p129 = scmp.ne.s32.totalorder %s118, %s119
      %p130 = scmp.eq.s32.totalorder %s26, 0
      %p131 = por %p129, %p130
      %p132 = scmp.ne.s32.totalorder %s118, %s119
      %p133 = scmp.eq.s32.totalorder %s27, 1
      %p134 = por %p132, %p133
      %p136 = scmp.ne.s32.totalorder %s119, %s135
      %p137 = scmp.eq.s32.totalorder %s27, 0
      %p138 = por %p136, %p137
      %s139 = ssub.s32 %s28, %s40
      %s140 = ssub.s32 %s29, %s36
      %s141 = sor.u32 %s139, %s140
      %p142 = scmp.eq.s32.totalorder %s141, 0
      %s144 = sadd.s32 %s143, 1
      %s145 = scalar_select %p142, %s143, %s144
      %p148 = pneg %p142
      %p149 = scmp.eq.s32.totalorder %s21, 1
      %p150 = por %p148, %p149
      %p151 = scmp.ne.s32.totalorder %s143, %s146
      %p152 = scmp.eq.s32.totalorder %s21, 0
      %p153 = por %p151, %p152
      %p154 = scmp.ne.s32.totalorder %s143, %s146
      %p155 = scmp.eq.s32.totalorder %s26, 1
      %p156 = por %p154, %p155
      %p157 = scmp.ne.s32.totalorder %s146, %s147
      %p158 = scmp.eq.s32.totalorder %s26, 0
      %p159 = por %p157, %p158
      %p160 = scmp.ne.s32.totalorder %s146, %s147
      %p161 = scmp.eq.s32.totalorder %s27, 1
      %p162 = por %p160, %p161
      %p164 = scmp.ne.s32.totalorder %s147, %s163
      %p165 = scmp.eq.s32.totalorder %s27, 0
      %p166 = por %p164, %p165
      %p167 = scmp.le.s32.totalorder 1, %s21
      %p168 = scmp.lt.s32.totalorder %s21, 3
      %p169 = pnand %p167, %p168
      %p170 = pneg %p169
      // Predicated region
      $region9: #{tpu_custom_call.1} parent=5 // pred_check
        _
      $region10: #{tpu_custom_call.1} parent=5 // pred_check_branch
        %172 = sbr.rel (%p169) target = $region12
      $region11: #{tpu_custom_call.1} parent=5 // pred_region
        %s173 = ssub.s32 %s21, 1
        // Predicated region
        $region13: #{tpu_custom_call.1} parent=11 // pred_check
          %p174 = pneg %p82
        $region14: #{tpu_custom_call.1} parent=11 // pred_check_branch
          %176 = sbr.rel (%p174) target = $region16
        $region15: #{tpu_custom_call.1} parent=11 // pred_region
          %178 = vsyncadd [#allocation6], 0
          %s179 = sshll.u32 %s1, 4
          %s180 = int_to_ptr.hbm [resolvable:$true] %s179
          %s181 = sshll.u32 [#allocation5], 4
          %s182 = int_to_ptr.vmem [resolvable:$true] %s181
          %187 = dma.hbm_to_vmem [thread:$0]  %s180, 16384, %s182, [#allocation6], 128, 128, 8
        $region16: #{tpu_custom_call.1} parent=11 // pred_fallthru
          _
        // Predicated region
        $region17: #{tpu_custom_call.1} parent=11 // pred_check
          %p188 = pneg %p103
        $region18: #{tpu_custom_call.1} parent=11 // pred_check_branch
          %190 = sbr.rel (%p188) target = $region20
        $region19: #{tpu_custom_call.1} parent=11 // pred_region
          %192 = vsyncadd [#allocation6], 0
          %s193 = sshll.u32 %s2, 4
          %s194 = int_to_ptr.hbm [resolvable:$true] %s193
          %s195 = sshll.u32 [#allocation7], 4
          %s196 = int_to_ptr.vmem [resolvable:$true] %s195
          %201 = dma.hbm_to_vmem [thread:$0]  %s194, 64, %s196, [#allocation6], 16, 16, 1
        $region20: #{tpu_custom_call.1} parent=11 // pred_fallthru
          _
      $region12: #{tpu_custom_call.1} parent=5 // pred_fallthru
        _
      %p202 = scmp.lt.s32.totalorder %s21, 2
      // Predicated region
      $region21: #{tpu_custom_call.1} parent=5 // pred_check
        %p203 = pneg %p202
      $region22: #{tpu_custom_call.1} parent=5 // pred_check_branch
        %205 = sbr.rel (%p203) target = $region24
      $region23: #{tpu_custom_call.1} parent=5 // pred_region
        // Predicated region
        $region25: #{tpu_custom_call.1} parent=23 // pred_check
          %p206 = pneg %p55
        $region26: #{tpu_custom_call.1} parent=23 // pred_check_branch
          %208 = sbr.rel (%p206) target = $region28
        $region27: #{tpu_custom_call.1} parent=23 // pred_region
          %s209 = sand.u32 %s45, 1
          %s210 = scalar_lea.sflag [#allocation3], %s209
          %s211 = sand.u32 %s45, 1
          %s212 = smul.addr %s211, 32
          %s213 = scalar_lea.vmem [#allocation2], %s212
          %s214 = smul.u32 2, %s29
          %216 = vsyncadd %s210, 0
          %s217 = smul.addr %s214, 2
          %s218 = smul.addr %s28, 4
          %s219 = sadd.s32 %s217, %s218
          %s220 = smul.addr %s219, 8
          %s221 = scalar_lea.hbm %s0, %s220
          %s222 = sshll.u32 %s221, 4
          %s223 = int_to_ptr.hbm [resolvable:$true] %s222
          %s224 = sshll.u32 %s213, 4
          %s225 = int_to_ptr.vmem [resolvable:$true] %s224
          %230 = dma.hbm_to_vmem [thread:$0]  %s223, 512, %s225, %s210, 256, 256, 16
        $region28: #{tpu_custom_call.1} parent=23 // pred_fallthru
          _
      $region24: #{tpu_custom_call.1} parent=5 // pred_fallthru
        _
      %p231 = scmp.le.s32.totalorder 1, %s21
      %p232 = scmp.lt.s32.totalorder %s21, 3
      %p233 = pnand %p231, %p232
      %p234 = pneg %p233
      // Predicated region
      $region29: #{tpu_custom_call.1} parent=5 // pred_check
        _
      $region30: #{tpu_custom_call.1} parent=5 // pred_check_branch
        %236 = sbr.rel (%p233) target = $region32
      $region31: #{tpu_custom_call.1} parent=5 // pred_region
        %s237 = ssub.s32 %s21, 1
        %s238 = sand.u32 %s48, 1
        %s239 = scalar_lea.sflag [#allocation3], %s238
        %s240 = sand.u32 %s48, 1
        %s241 = smul.addr %s240, 32
        %s242 = scalar_lea.vmem [#allocation2], %s241
        // Predicated region
        $region33: #{tpu_custom_call.1} parent=31 // pred_check
          %p243 = pneg %p61
        $region34: #{tpu_custom_call.1} parent=31 // pred_check_branch
          %245 = sbr.rel (%p243) target = $region36
        $region35: #{tpu_custom_call.1} parent=31 // pred_region
          %247 = dma.done %s239, 512
        $region36: #{tpu_custom_call.1} parent=31 // pred_fallthru
          _
        // Predicated region
        $region37: #{tpu_custom_call.1} parent=31 // pred_check
          %p248 = pneg %p82
        $region38: #{tpu_custom_call.1} parent=31 // pred_check_branch
          %250 = sbr.rel (%p248) target = $region40
        $region39: #{tpu_custom_call.1} parent=31 // pred_region
          %252 = dma.done [#allocation6], 16384
        $region40: #{tpu_custom_call.1} parent=31 // pred_fallthru
          _
        // Predicated region
        $region41: #{tpu_custom_call.1} parent=31 // pred_check
          %p253 = pneg %p103
        $region42: #{tpu_custom_call.1} parent=31 // pred_check_branch
          %255 = sbr.rel (%p253) target = $region44
        $region43: #{tpu_custom_call.1} parent=31 // pred_region
          %257 = dma.done [#allocation6], 64
        $region44: #{tpu_custom_call.1} parent=31 // pred_fallthru
          _
        %s258 = sand.u32 %s48, 1
        %s259 = scalar_lea.sflag [#allocation3], %s258
        %s260 = sand.u32 %s48, 1
        %s261 = smul.addr %s260, 32
        %s262 = scalar_lea.vmem [#allocation2], %s261
        %p263 = pneg %p61
        %p264 = pneg %p58
        %p265 = pneg %p82
        %p266 = pneg %p79
        %p267 = pneg %p103
        %p268 = pneg %p100
        %p269 = pneg %p131
        %p270 = pneg %p128
        %s271 = sand.u32 %s118, 1
        %s272 = scalar_lea.sflag [#allocation4], %s271
        %s273 = sand.u32 %s118, 1
        %s274 = smul.addr %s273, 32
        %s275 = scalar_lea.vmem [#allocation8], %s274
        %p276 = pneg %p159
        %p277 = pneg %p156
        %s278 = sand.u32 %s146, 1
        %s279 = scalar_lea.sflag [#allocation10], %s278
        %s280 = sand.u32 %s146, 1
        %s281 = smul.addr %s280, 32
        %s282 = scalar_lea.vmem [#allocation9], %s281
        %s283 = smul.u32 2, %s31
        %s284 = smul.u32 2, %s31
        %s285 = smul.u32 2, %s31
        %v286 = vld [vmem:[%s242] sm:$0xff]
        %v287 = vld [vmem:[%s242 + $0x8] sm:$0xff]
        %v288 = vld [vmem:[%s242 + $0x10] sm:$0xff]
        %v289 = vld [vmem:[%s242 + $0x18] sm:$0xff]
        %v290 = vld [vmem:[#allocation5] sm:$0xff]
        %v291 = vld [vmem:[#allocation5 + $0x8] sm:$0xff]
        %v292 = vld [vmem:[#allocation5 + $0x10] sm:$0xff]
        %v293 = vld [vmem:[#allocation5 + $0x18] sm:$0xff]
        %v294 = vld [vmem:[#allocation5 + $0x20] sm:$0xff]
        %v295 = vld [vmem:[#allocation5 + $0x28] sm:$0xff]
        %v296 = vld [vmem:[#allocation5 + $0x30] sm:$0xff]
        %v297 = vld [vmem:[#allocation5 + $0x38] sm:$0xff]
        %v298 = vld [vmem:[#allocation5 + $0x40] sm:$0xff]
        %v299 = vld [vmem:[#allocation5 + $0x48] sm:$0xff]
        %v300 = vld [vmem:[#allocation5 + $0x50] sm:$0xff]
        %v301 = vld [vmem:[#allocation5 + $0x58] sm:$0xff]
        %v302 = vld [vmem:[#allocation5 + $0x60] sm:$0xff]
        %v303 = vld [vmem:[#allocation5 + $0x68] sm:$0xff]
        %v304 = vld [vmem:[#allocation5 + $0x70] sm:$0xff]
        %v305 = vld [vmem:[#allocation5 + $0x78] sm:$0xff]
        %v306 = vld [vmem:[#allocation5 + $0x80] sm:$0xff]
        %v307 = vld [vmem:[#allocation5 + $0x88] sm:$0xff]
        %v308 = vld [vmem:[#allocation5 + $0x90] sm:$0xff]
        %v309 = vld [vmem:[#allocation5 + $0x98] sm:$0xff]
        %v310 = vld [vmem:[#allocation5 + $0xa0] sm:$0xff]
        %v311 = vld [vmem:[#allocation5 + $0xa8] sm:$0xff]
        %v312 = vld [vmem:[#allocation5 + $0xb0] sm:$0xff]
        %v313 = vld [vmem:[#allocation5 + $0xb8] sm:$0xff]
        %v314 = vld [vmem:[#allocation5 + $0xc0] sm:$0xff]
        %v315 = vld [vmem:[#allocation5 + $0xc8] sm:$0xff]
        %v316 = vld [vmem:[#allocation5 + $0xd0] sm:$0xff]
        %v317 = vld [vmem:[#allocation5 + $0xd8] sm:$0xff]
        %v318 = vld [vmem:[#allocation5 + $0xe0] sm:$0xff]
        %v319 = vld [vmem:[#allocation5 + $0xe8] sm:$0xff]
        %v320 = vld [vmem:[#allocation5 + $0xf0] sm:$0xff]
        %v321 = vld [vmem:[#allocation5 + $0xf8] sm:$0xff]
        %v322 = vld [vmem:[#allocation7] sm:$0x1]
        %v324 = vperm.slane %v322, 0
        %326 = vmatpush.msra.mxu0 %v305
        %327 = vmatpush.msra.mxu0 %v304
        %328 = vmatpush.msra.mxu0 %v303
        %329 = vmatpush.msra.mxu0 %v302
        %330 = vmatpush.msra.mxu0 %v301
        %331 = vmatpush.msra.mxu0 %v300
        %332 = vmatpush.msra.mxu0 %v299
        %333 = vmatpush.msra.mxu0 %v298
        %334 = vmatpush.msra.mxu0 %v297
        %335 = vmatpush.msra.mxu0 %v296
        %336 = vmatpush.msra.mxu0 %v295
        %337 = vmatpush.msra.mxu0 %v294
        %338 = vmatpush.msra.mxu0 %v293
        %339 = vmatpush.msra.mxu0 %v292
        %340 = vmatpush.msra.mxu0 %v291
        %341 = vmatpush.msra.mxu0 %v290
        %342 = vmatmul.f32.gmra.mxu0 %v286
        %v343 = vpop.f32.mrf.mxu0
        %v344 = vadd.f32 %v324, %v343
        %345 = vmatmul.f32.gmra.mxu0 %v288
        %v346 = vpop.f32.mrf.mxu0
        %v347 = vadd.f32 %v324, %v346
        %348 = vdwg.mxu0
        %349 = vmatpush.msra.mxu0 %v321
        %350 = vmatpush.msra.mxu0 %v320
        %351 = vmatpush.msra.mxu0 %v319
        %352 = vmatpush.msra.mxu0 %v318
        %353 = vmatpush.msra.mxu0 %v317
        %354 = vmatpush.msra.mxu0 %v316
        %355 = vmatpush.msra.mxu0 %v315
        %356 = vmatpush.msra.mxu0 %v314
        %357 = vmatpush.msra.mxu0 %v313
        %358 = vmatpush.msra.mxu0 %v312
        %359 = vmatpush.msra.mxu0 %v311
        %360 = vmatpush.msra.mxu0 %v310
        %361 = vmatpush.msra.mxu0 %v309
        %362 = vmatpush.msra.mxu0 %v308
        %363 = vmatpush.msra.mxu0 %v307
        %364 = vmatpush.msra.mxu0 %v306
        %365 = vmatmul.f32.gmra.mxu0 %v287
        %v366 = vpop.f32.mrf.mxu0
        %v367 = vadd.f32 %v344, %v366
        %368 = vmatmul.f32.gmra.mxu0 %v289
        %v369 = vpop.f32.mrf.mxu0
        %v370 = vadd.f32 %v347, %v369
        %371 = vdwg.mxu0
        %s372 = scalar_lea.vmem [#allocation5], 512
        %v373 = vld [vmem:[%s372] sm:$0xff]
        %v374 = vld [vmem:[%s372 + $0x8] sm:$0xff]
        %v375 = vld [vmem:[%s372 + $0x10] sm:$0xff]
        %v376 = vld [vmem:[%s372 + $0x18] sm:$0xff]
        %v377 = vld [vmem:[%s372 + $0x20] sm:$0xff]
        %v378 = vld [vmem:[%s372 + $0x28] sm:$0xff]
        %v379 = vld [vmem:[%s372 + $0x30] sm:$0xff]
        %v380 = vld [vmem:[%s372 + $0x38] sm:$0xff]
        %v381 = vld [vmem:[%s372 + $0x40] sm:$0xff]
        %v382 = vld [vmem:[%s372 + $0x48] sm:$0xff]
        %v383 = vld [vmem:[%s372 + $0x50] sm:$0xff]
        %v384 = vld [vmem:[%s372 + $0x58] sm:$0xff]
        %v385 = vld [vmem:[%s372 + $0x60] sm:$0xff]
        %v386 = vld [vmem:[%s372 + $0x68] sm:$0xff]
        %v387 = vld [vmem:[%s372 + $0x70] sm:$0xff]
        %v388 = vld [vmem:[%s372 + $0x78] sm:$0xff]
        %v389 = vld [vmem:[%s372 + $0x80] sm:$0xff]
        %v390 = vld [vmem:[%s372 + $0x88] sm:$0xff]
        %v391 = vld [vmem:[%s372 + $0x90] sm:$0xff]
        %v392 = vld [vmem:[%s372 + $0x98] sm:$0xff]
        %v393 = vld [vmem:[%s372 + $0xa0] sm:$0xff]
        %v394 = vld [vmem:[%s372 + $0xa8] sm:$0xff]
        %v395 = vld [vmem:[%s372 + $0xb0] sm:$0xff]
        %v396 = vld [vmem:[%s372 + $0xb8] sm:$0xff]
        %v397 = vld [vmem:[%s372 + $0xc0] sm:$0xff]
        %v398 = vld [vmem:[%s372 + $0xc8] sm:$0xff]
        %v399 = vld [vmem:[%s372 + $0xd0] sm:$0xff]
        %v400 = vld [vmem:[%s372 + $0xd8] sm:$0xff]
        %v401 = vld [vmem:[%s372 + $0xe0] sm:$0xff]
        %v402 = vld [vmem:[%s372 + $0xe8] sm:$0xff]
        %v403 = vld [vmem:[%s372 + $0xf0] sm:$0xff]
        %v404 = vld [vmem:[%s372 + $0xf8] sm:$0xff]
        %s405 = scalar_lea.vmem [#allocation7], 2
        %v406 = vld [vmem:[%s405] sm:$0x1]
        %v408 = vperm.slane %v406, 0
        %410 = vmatpush.msra.mxu0 %v388
        %411 = vmatpush.msra.mxu0 %v387
        %412 = vmatpush.msra.mxu0 %v386
        %413 = vmatpush.msra.mxu0 %v385
        %414 = vmatpush.msra.mxu0 %v384
        %415 = vmatpush.msra.mxu0 %v383
        %416 = vmatpush.msra.mxu0 %v382
        %417 = vmatpush.msra.mxu0 %v381
        %418 = vmatpush.msra.mxu0 %v380
        %419 = vmatpush.msra.mxu0 %v379
        %420 = vmatpush.msra.mxu0 %v378
        %421 = vmatpush.msra.mxu0 %v377
        %422 = vmatpush.msra.mxu0 %v376
        %423 = vmatpush.msra.mxu0 %v375
        %424 = vmatpush.msra.mxu0 %v374
        %425 = vmatpush.msra.mxu0 %v373
        %426 = vmatmul.f32.gmra.mxu0 %v286
        %v427 = vpop.f32.mrf.mxu0
        %v428 = vadd.f32 %v408, %v427
        %429 = vmatmul.f32.gmra.mxu0 %v288
        %v430 = vpop.f32.mrf.mxu0
        %v431 = vadd.f32 %v408, %v430
        %432 = vdwg.mxu0
        %433 = vmatpush.msra.mxu0 %v404
        %434 = vmatpush.msra.mxu0 %v403
        %435 = vmatpush.msra.mxu0 %v402
        %436 = vmatpush.msra.mxu0 %v401
        %437 = vmatpush.msra.mxu0 %v400
        %438 = vmatpush.msra.mxu0 %v399
        %439 = vmatpush.msra.mxu0 %v398
        %440 = vmatpush.msra.mxu0 %v397
        %441 = vmatpush.msra.mxu0 %v396
        %442 = vmatpush.msra.mxu0 %v395
        %443 = vmatpush.msra.mxu0 %v394
        %444 = vmatpush.msra.mxu0 %v393
        %445 = vmatpush.msra.mxu0 %v392
        %446 = vmatpush.msra.mxu0 %v391
        %447 = vmatpush.msra.mxu0 %v390
        %448 = vmatpush.msra.mxu0 %v389
        %449 = vmatmul.f32.gmra.mxu0 %v287
        %v450 = vpop.f32.mrf.mxu0
        %v451 = vadd.f32 %v428, %v450
        %452 = vmatmul.f32.gmra.mxu0 %v289
        %v453 = vpop.f32.mrf.mxu0
        %v454 = vadd.f32 %v431, %v453
        %455 = vdwg.mxu0
        %456 = vst [vmem:[%s275] sm:$0xff] %v367
        %457 = vst [vmem:[%s275 + $0x8] sm:$0xff] %v370
        %458 = vst [vmem:[%s282] sm:$0xff] %v451
        %459 = vst [vmem:[%s282 + $0x8] sm:$0xff] %v454
        %s460 = scalar_lea.vmem [#allocation5], 256
        %v461 = vld [vmem:[%s460] sm:$0xff]
        %v462 = vld [vmem:[%s460 + $0x8] sm:$0xff]
        %v463 = vld [vmem:[%s460 + $0x10] sm:$0xff]
        %v464 = vld [vmem:[%s460 + $0x18] sm:$0xff]
        %v465 = vld [vmem:[%s460 + $0x20] sm:$0xff]
        %v466 = vld [vmem:[%s460 + $0x28] sm:$0xff]
        %v467 = vld [vmem:[%s460 + $0x30] sm:$0xff]
        %v468 = vld [vmem:[%s460 + $0x38] sm:$0xff]
        %v469 = vld [vmem:[%s460 + $0x40] sm:$0xff]
        %v470 = vld [vmem:[%s460 + $0x48] sm:$0xff]
        %v471 = vld [vmem:[%s460 + $0x50] sm:$0xff]
        %v472 = vld [vmem:[%s460 + $0x58] sm:$0xff]
        %v473 = vld [vmem:[%s460 + $0x60] sm:$0xff]
        %v474 = vld [vmem:[%s460 + $0x68] sm:$0xff]
        %v475 = vld [vmem:[%s460 + $0x70] sm:$0xff]
        %v476 = vld [vmem:[%s460 + $0x78] sm:$0xff]
        %v477 = vld [vmem:[%s460 + $0x80] sm:$0xff]
        %v478 = vld [vmem:[%s460 + $0x88] sm:$0xff]
        %v479 = vld [vmem:[%s460 + $0x90] sm:$0xff]
        %v480 = vld [vmem:[%s460 + $0x98] sm:$0xff]
        %v481 = vld [vmem:[%s460 + $0xa0] sm:$0xff]
        %v482 = vld [vmem:[%s460 + $0xa8] sm:$0xff]
        %v483 = vld [vmem:[%s460 + $0xb0] sm:$0xff]
        %v484 = vld [vmem:[%s460 + $0xb8] sm:$0xff]
        %v485 = vld [vmem:[%s460 + $0xc0] sm:$0xff]
        %v486 = vld [vmem:[%s460 + $0xc8] sm:$0xff]
        %v487 = vld [vmem:[%s460 + $0xd0] sm:$0xff]
        %v488 = vld [vmem:[%s460 + $0xd8] sm:$0xff]
        %v489 = vld [vmem:[%s460 + $0xe0] sm:$0xff]
        %v490 = vld [vmem:[%s460 + $0xe8] sm:$0xff]
        %v491 = vld [vmem:[%s460 + $0xf0] sm:$0xff]
        %v492 = vld [vmem:[%s460 + $0xf8] sm:$0xff]
        %s493 = scalar_lea.vmem [#allocation7], 1
        %v494 = vld [vmem:[%s493] sm:$0x1]
        %v496 = vperm.slane %v494, 0
        %498 = vmatpush.msra.mxu0 %v476
        %499 = vmatpush.msra.mxu0 %v475
        %500 = vmatpush.msra.mxu0 %v474
        %501 = vmatpush.msra.mxu0 %v473
        %502 = vmatpush.msra.mxu0 %v472
        %503 = vmatpush.msra.mxu0 %v471
        %504 = vmatpush.msra.mxu0 %v470
        %505 = vmatpush.msra.mxu0 %v469
        %506 = vmatpush.msra.mxu0 %v468
        %507 = vmatpush.msra.mxu0 %v467
        %508 = vmatpush.msra.mxu0 %v466
        %509 = vmatpush.msra.mxu0 %v465
        %510 = vmatpush.msra.mxu0 %v464
        %511 = vmatpush.msra.mxu0 %v463
        %512 = vmatpush.msra.mxu0 %v462
        %513 = vmatpush.msra.mxu0 %v461
        %514 = vmatmul.f32.gmra.mxu0 %v286
        %v515 = vpop.f32.mrf.mxu0
        %v516 = vadd.f32 %v496, %v515
        %517 = vmatmul.f32.gmra.mxu0 %v288
        %v518 = vpop.f32.mrf.mxu0
        %v519 = vadd.f32 %v496, %v518
        %520 = vdwg.mxu0
        %521 = vmatpush.msra.mxu0 %v492
        %522 = vmatpush.msra.mxu0 %v491
        %523 = vmatpush.msra.mxu0 %v490
        %524 = vmatpush.msra.mxu0 %v489
        %525 = vmatpush.msra.mxu0 %v488
        %526 = vmatpush.msra.mxu0 %v487
        %527 = vmatpush.msra.mxu0 %v486
        %528 = vmatpush.msra.mxu0 %v485
        %529 = vmatpush.msra.mxu0 %v484
        %530 = vmatpush.msra.mxu0 %v483
        %531 = vmatpush.msra.mxu0 %v482
        %532 = vmatpush.msra.mxu0 %v481
        %533 = vmatpush.msra.mxu0 %v480
        %534 = vmatpush.msra.mxu0 %v479
        %535 = vmatpush.msra.mxu0 %v478
        %536 = vmatpush.msra.mxu0 %v477
        %537 = vmatmul.f32.gmra.mxu0 %v287
        %v538 = vpop.f32.mrf.mxu0
        %v539 = vadd.f32 %v516, %v538
        %540 = vmatmul.f32.gmra.mxu0 %v289
        %v541 = vpop.f32.mrf.mxu0
        %v542 = vadd.f32 %v519, %v541
        %543 = vdwg.mxu0
        %s544 = scalar_lea.vmem [#allocation5], 768
        %v545 = vld [vmem:[%s544] sm:$0xff]
        %v546 = vld [vmem:[%s544 + $0x8] sm:$0xff]
        %v547 = vld [vmem:[%s544 + $0x10] sm:$0xff]
        %v548 = vld [vmem:[%s544 + $0x18] sm:$0xff]
        %v549 = vld [vmem:[%s544 + $0x20] sm:$0xff]
        %v550 = vld [vmem:[%s544 + $0x28] sm:$0xff]
        %v551 = vld [vmem:[%s544 + $0x30] sm:$0xff]
        %v552 = vld [vmem:[%s544 + $0x38] sm:$0xff]
        %v553 = vld [vmem:[%s544 + $0x40] sm:$0xff]
        %v554 = vld [vmem:[%s544 + $0x48] sm:$0xff]
        %v555 = vld [vmem:[%s544 + $0x50] sm:$0xff]
        %v556 = vld [vmem:[%s544 + $0x58] sm:$0xff]
        %v557 = vld [vmem:[%s544 + $0x60] sm:$0xff]
        %v558 = vld [vmem:[%s544 + $0x68] sm:$0xff]
        %v559 = vld [vmem:[%s544 + $0x70] sm:$0xff]
        %v560 = vld [vmem:[%s544 + $0x78] sm:$0xff]
        %v561 = vld [vmem:[%s544 + $0x80] sm:$0xff]
        %v562 = vld [vmem:[%s544 + $0x88] sm:$0xff]
        %v563 = vld [vmem:[%s544 + $0x90] sm:$0xff]
        %v564 = vld [vmem:[%s544 + $0x98] sm:$0xff]
        %v565 = vld [vmem:[%s544 + $0xa0] sm:$0xff]
        %v566 = vld [vmem:[%s544 + $0xa8] sm:$0xff]
        %v567 = vld [vmem:[%s544 + $0xb0] sm:$0xff]
        %v568 = vld [vmem:[%s544 + $0xb8] sm:$0xff]
        %v569 = vld [vmem:[%s544 + $0xc0] sm:$0xff]
        %v570 = vld [vmem:[%s544 + $0xc8] sm:$0xff]
        %v571 = vld [vmem:[%s544 + $0xd0] sm:$0xff]
        %v572 = vld [vmem:[%s544 + $0xd8] sm:$0xff]
        %v573 = vld [vmem:[%s544 + $0xe0] sm:$0xff]
        %v574 = vld [vmem:[%s544 + $0xe8] sm:$0xff]
        %v575 = vld [vmem:[%s544 + $0xf0] sm:$0xff]
        %v576 = vld [vmem:[%s544 + $0xf8] sm:$0xff]
        %s577 = scalar_lea.vmem [#allocation7], 3
        %v578 = vld [vmem:[%s577] sm:$0x1]
        %v580 = vperm.slane %v578, 0
        %582 = vmatpush.msra.mxu0 %v560
        %583 = vmatpush.msra.mxu0 %v559
        %584 = vmatpush.msra.mxu0 %v558
        %585 = vmatpush.msra.mxu0 %v557
        %586 = vmatpush.msra.mxu0 %v556
        %587 = vmatpush.msra.mxu0 %v555
        %588 = vmatpush.msra.mxu0 %v554
        %589 = vmatpush.msra.mxu0 %v553
        %590 = vmatpush.msra.mxu0 %v552
        %591 = vmatpush.msra.mxu0 %v551
        %592 = vmatpush.msra.mxu0 %v550
        %593 = vmatpush.msra.mxu0 %v549
        %594 = vmatpush.msra.mxu0 %v548
        %595 = vmatpush.msra.mxu0 %v547
        %596 = vmatpush.msra.mxu0 %v546
        %597 = vmatpush.msra.mxu0 %v545
        %598 = vmatmul.f32.gmra.mxu0 %v286
        %v599 = vpop.f32.mrf.mxu0
        %v600 = vadd.f32 %v580, %v599
        %601 = vmatmul.f32.gmra.mxu0 %v288
        %v602 = vpop.f32.mrf.mxu0
        %v603 = vadd.f32 %v580, %v602
        %604 = vdwg.mxu0
        %605 = vmatpush.msra.mxu0 %v576
        %606 = vmatpush.msra.mxu0 %v575
        %607 = vmatpush.msra.mxu0 %v574
        %608 = vmatpush.msra.mxu0 %v573
        %609 = vmatpush.msra.mxu0 %v572
        %610 = vmatpush.msra.mxu0 %v571
        %611 = vmatpush.msra.mxu0 %v570
        %612 = vmatpush.msra.mxu0 %v569
        %613 = vmatpush.msra.mxu0 %v568
        %614 = vmatpush.msra.mxu0 %v567
        %615 = vmatpush.msra.mxu0 %v566
        %616 = vmatpush.msra.mxu0 %v565
        %617 = vmatpush.msra.mxu0 %v564
        %618 = vmatpush.msra.mxu0 %v563
        %619 = vmatpush.msra.mxu0 %v562
        %620 = vmatpush.msra.mxu0 %v561
        %621 = vmatmul.f32.gmra.mxu0 %v287
        %v622 = vpop.f32.mrf.mxu0
        %v623 = vadd.f32 %v600, %v622
        %624 = vmatmul.f32.gmra.mxu0 %v289
        %v625 = vpop.f32.mrf.mxu0
        %v626 = vadd.f32 %v603, %v625
        %627 = vdwg.mxu0
        %s628 = scalar_lea.vmem %s275, 16 [#allocation8]
        %629 = vst [vmem:[%s628] sm:$0xff] %v539
        %630 = vst [vmem:[%s628 + $0x8] sm:$0xff] %v542
        %s631 = scalar_lea.vmem %s282, 16 [#allocation9]
        %632 = vst [vmem:[%s631] sm:$0xff] %v623
        %633 = vst [vmem:[%s631 + $0x8] sm:$0xff] %v626
        %s634 = sand.u32 %s118, 1
        %s635 = scalar_lea.sflag [#allocation4], %s634
        %s636 = sand.u32 %s118, 1
        %s637 = smul.addr %s636, 32
        %s638 = scalar_lea.vmem [#allocation8], %s637
        %s639 = sand.u32 %s146, 1
        %s640 = scalar_lea.sflag [#allocation10], %s639
        %s641 = sand.u32 %s146, 1
        %s642 = smul.addr %s641, 32
        %s643 = scalar_lea.vmem [#allocation9], %s642
        // Predicated region
        $region45: #{tpu_custom_call.1} parent=31 // pred_check
          %p644 = pneg %p128
        $region46: #{tpu_custom_call.1} parent=31 // pred_check_branch
          %646 = sbr.rel (%p644) target = $region48
        $region47: #{tpu_custom_call.1} parent=31 // pred_region
          %s647 = smul.u32 2, %s31
          %649 = vsyncadd %s635, 0
          %s650 = smul.addr %s30, 4
          %s651 = sadd.s32 %s647, %s650
          %s652 = smul.addr %s651, 8
          %s653 = scalar_lea.hbm %s3, %s652
          %s654 = sshll.u32 %s638, 4
          %s655 = int_to_ptr.vmem [resolvable:$true] %s654
          %s656 = sshll.u32 %s653, 4
          %s657 = int_to_ptr.hbm [resolvable:$true] %s656
          %662 = dma.vmem_to_hbm [thread:$0]  %s655, 512, %s657, %s635, 128, 128, 8
        $region48: #{tpu_custom_call.1} parent=31 // pred_fallthru
          _
        // Predicated region
        $region49: #{tpu_custom_call.1} parent=31 // pred_check
          %p663 = pneg %p156
        $region50: #{tpu_custom_call.1} parent=31 // pred_check_branch
          %665 = sbr.rel (%p663) target = $region52
        $region51: #{tpu_custom_call.1} parent=31 // pred_region
          %s666 = smul.u32 2, %s31
          %668 = vsyncadd %s640, 0
          %s669 = smul.addr %s30, 4
          %s670 = sadd.s32 %s666, %s669
          %s671 = smul.addr %s670, 8
          %s672 = scalar_lea.hbm %s4, %s671
          %s673 = sshll.u32 %s643, 4
          %s674 = int_to_ptr.vmem [resolvable:$true] %s673
          %s675 = sshll.u32 %s672, 4
          %s676 = int_to_ptr.hbm [resolvable:$true] %s675
          %681 = dma.vmem_to_hbm [thread:$0]  %s674, 512, %s676, %s640, 128, 128, 8
        $region52: #{tpu_custom_call.1} parent=31 // pred_fallthru
          _
      $region32: #{tpu_custom_call.1} parent=5 // pred_fallthru
        _
      %p682 = scmp.le.s32.totalorder 2, %s21
      // Predicated region
      $region53: #{tpu_custom_call.1} parent=5 // pred_check
        %p683 = pneg %p682
      $region54: #{tpu_custom_call.1} parent=5 // pred_check_branch
        %685 = sbr.rel (%p683) target = $region56
      $region55: #{tpu_custom_call.1} parent=5 // pred_region
        %s686 = ssub.s32 %s21, 2
        // Predicated region
        $region57: #{tpu_custom_call.1} parent=55 // pred_check
          %p687 = pneg %p134
        $region58: #{tpu_custom_call.1} parent=55 // pred_check_branch
          %689 = sbr.rel (%p687) target = $region60
        $region59: #{tpu_custom_call.1} parent=55 // pred_region
          %s690 = sand.u32 %s119, 1
          %s691 = scalar_lea.sflag [#allocation4], %s690
          %s692 = sand.u32 %s119, 1
          %s693 = smul.addr %s692, 32
          %s694 = scalar_lea.vmem [#allocation8], %s693
          %696 = dma.done %s691, 512
        $region60: #{tpu_custom_call.1} parent=55 // pred_fallthru
          _
        // Predicated region
        $region61: #{tpu_custom_call.1} parent=55 // pred_check
          %p697 = pneg %p162
        $region62: #{tpu_custom_call.1} parent=55 // pred_check_branch
          %699 = sbr.rel (%p697) target = $region64
        $region63: #{tpu_custom_call.1} parent=55 // pred_region
          %s700 = sand.u32 %s147, 1
          %s701 = scalar_lea.sflag [#allocation10], %s700
          %s702 = sand.u32 %s147, 1
          %s703 = smul.addr %s702, 32
          %s704 = scalar_lea.vmem [#allocation9], %s703
          %706 = dma.done %s701, 512
        $region64: #{tpu_custom_call.1} parent=55 // pred_fallthru
          _
      $region56: #{tpu_custom_call.1} parent=5 // pred_fallthru
        _
    $region6: #{tpu_custom_call.1} parent=1 // loop_footer
      %s25 = sadd.s32 1, %s21
    $region7: #{tpu_custom_call.1} parent=1 // loop_footer_branch
      %20 = sbr.rel target = $region3
    $region8: #{tpu_custom_call.1} parent=1 // loop_exit
      _
    %707 = vsyncpa [#allocation3], 1
    %s708 = scalar_lea.sflag [#allocation3], 1
    %709 = vsyncpa %s708, 1
    %710 = vsyncpa [#allocation6], 1
    %711 = vsyncpa [#allocation4], 1
    %s712 = scalar_lea.sflag [#allocation4], 1
    %713 = vsyncpa %s712, 1
    %714 = vsyncpa [#allocation10], 1
    %s715 = scalar_lea.sflag [#allocation10], 1
    %716 = vsyncpa %s715, 1

</llo_original>
